<compile_context>
chip_gen: v5e
topology: v5e:2x2
jax: 0.10.0
libtpu: 0.0.40
codegen_flags: <defaults>
</compile_context>

<pallas_src>
import functools

import jax
import jax.numpy as jnp
from jax.experimental import pallas as pl
from jax.experimental.pallas import tpu as pltpu

NEG_SLOPE = 0.2              # GATv2Conv default leaky_relu negative slope
SOFTPLUS_THRESHOLD = 20.0    # F.softplus default threshold
NEG_BIG = -1e30              # additive mask value for non-edges


def _round_up(v, m):
    return ((v + m - 1) // m) * m


@functools.lru_cache(maxsize=None)
def _vmem_limit_bytes():
    # Never request the entire physical VMEM (64 MiB *is* all of it on v7x);
    # on 128 MiB parts (v5e/v6e) this allows larger tiles (~96 MiB).
    try:
        cap = int(pltpu.get_tpu_info().vmem_capacity_bytes)
    except Exception:
        cap = 64 * 1024 * 1024
    return max(32 * 1024 * 1024, (cap * 3) // 4)


# ---------------------------------------------------------------------------
# Kernel 1: fused projection  [xl | xr] = x @ [Wl | Wr] + [bl | br]
#   (bf16 operands from HBM, f32 MXU accumulate, lane-dense bf16 output)
# ---------------------------------------------------------------------------
def linear_kernel(x_ref, w_ref, b_ref, o_ref):
    acc = jnp.dot(x_ref[...], w_ref[...], preferred_element_type=jnp.float32)
    o_ref[...] = (acc + b_ref[...]).astype(o_ref.dtype)


def fused_projection(x, w, b, tile_i):
    n, f = x.shape
    k = w.shape[1]
    cost = pl.CostEstimate(
        flops=int(2 * n * f * k),
        transcendentals=0,
        bytes_accessed=int(2 * n * f + 2 * f * k + 4 * k + 2 * n * k))
    return pl.pallas_call(
        linear_kernel,
        out_shape=jax.ShapeDtypeStruct((n, k), jnp.bfloat16),
        grid_spec=pltpu.PrefetchScalarGridSpec(
            num_scalar_prefetch=0,
            grid=(n // tile_i,),
            in_specs=[
                pl.BlockSpec((tile_i, f), lambda i: (i, 0)),   # x row tile
                pl.BlockSpec((f, k), lambda i: (0, 0)),        # fused weights
                pl.BlockSpec((1, k), lambda i: (0, 0)),        # fused biases
            ],
            out_specs=pl.BlockSpec((tile_i, k), lambda i: (i, 0))),
        compiler_params=pltpu.CompilerParams(
            dimension_semantics=("parallel",),
            vmem_limit_bytes=_vmem_limit_bytes()),
        cost_estimate=cost,
    )(x, w, b)


# ---------------------------------------------------------------------------
# Kernel 2: GATv2 attention + aggregation.
#   grid = (dest tiles [parallel], source chunks [arbitrary])
#   flash-style online softmax over the source axis, per head.
# ---------------------------------------------------------------------------
def gatv2_attn_kernel(xr_ref, xl_ref, adjb_ref, att_ref, bias_ref, out_ref,
                      m_sc, l_sc, acc_sc, *, heads, cp, apply_softplus):
    j = pl.program_id(1)

    @pl.when(j == 0)
    def _():
        m_sc[...] = jnp.full_like(m_sc, NEG_BIG)
        l_sc[...] = jnp.zeros_like(l_sc)
        acc_sc[...] = jnp.zeros_like(acc_sc)

    xr = xr_ref[...]        # [TI, H*CP] bf16  destination features (lin_r)
    xl = xl_ref[...]        # [TJ, H*CP] bf16  source features      (lin_l)
    adjb = adjb_ref[...]    # [TI, TJ]   f32   additive mask: 0 edge / -1e30
    att = att_ref[...]      # [8, CP]    f32   attention vector per head

    for h in range(heads):                       # static unroll, heads small
        lo = h * cp                              # 128-aligned head block
        xr_h = xr[:, lo:lo + cp]                 # [TI, CP]
        xl_h = xl[:, lo:lo + cp]                 # [TJ, CP]
        att_h = att[h:h + 1, :].astype(jnp.bfloat16)[None]     # [1, 1, CP]

        # GATv2 score: att_h . leaky_relu(xr[i] + xl[j])  (bf16 VPU work,
        # length-CP reduction; no MXU, no per-head minor-dim relayout).
        pair = xr_h[:, None, :] + xl_h[None, :, :]              # [TI, TJ, CP]
        pair = jnp.where(pair > 0, pair, NEG_SLOPE * pair)
        s = jnp.sum((pair * att_h).astype(jnp.float32), axis=-1)  # [TI, TJ]
        s = s + adjb                                             # mask

        # online softmax over j (f32 running max / sum)
        m_prev = m_sc[h]                                         # [TI, 1]
        m_new = jnp.maximum(m_prev, jnp.max(s, axis=1, keepdims=True))
        scale = jnp.exp(m_prev - m_new)                          # [TI, 1]
        p = jnp.exp(s - m_new)                                   # [TI, TJ]
        l_sc[h] = scale * l_sc[h] + jnp.sum(p, axis=1, keepdims=True)
        m_sc[h] = m_new

        # aggregation on the MXU: alpha-chunk @ xl_h  (K = TJ, f32 accum)
        agg = jnp.dot(p.astype(jnp.bfloat16), xl_h,
                      preferred_element_type=jnp.float32)        # [TI, CP]
        acc_sc[:, lo:lo + cp] = scale * acc_sc[:, lo:lo + cp] + agg

    @pl.when(j == pl.num_programs(1) - 1)
    def _():
        for h in range(heads):
            lo = h * cp
            inv = pl.reciprocal(l_sc[h], approx=True)            # EUP
            acc_sc[:, lo:lo + cp] = acc_sc[:, lo:lo + cp] * inv
        res = acc_sc[...] + bias_ref[...]
        if apply_softplus:
            res = jnp.where(res > SOFTPLUS_THRESHOLD, res,
                            jnp.log1p(jnp.exp(
                                jnp.minimum(res, SOFTPLUS_THRESHOLD))))
        out_ref[...] = res.astype(out_ref.dtype)   # one lane-dense slab write


def gatv2_attention(xl, xr, adj_bias, attp, biasp, *, heads, cp,
                    tile_i, tile_j, apply_softplus, out_dtype):
    n_pad, hcpw = xl.shape
    ni, nj = n_pad // tile_i, n_pad // tile_j
    kernel = functools.partial(gatv2_attn_kernel, heads=heads, cp=cp,
                               apply_softplus=apply_softplus)
    cost = pl.CostEstimate(
        flops=int(heads * n_pad * n_pad * cp * 6),
        transcendentals=int(heads * n_pad * n_pad),
        bytes_accessed=int(4 * n_pad * hcpw + 4 * n_pad * n_pad
                           + 4 * n_pad * hcpw))
    return pl.pallas_call(
        kernel,
        out_shape=jax.ShapeDtypeStruct((n_pad, hcpw), out_dtype),
        grid_spec=pltpu.PrefetchScalarGridSpec(
            num_scalar_prefetch=0,
            grid=(ni, nj),
            in_specs=[
                pl.BlockSpec((tile_i, hcpw), lambda i, j: (i, 0)),    # xr
                pl.BlockSpec((tile_j, hcpw), lambda i, j: (j, 0)),    # xl chunk
                pl.BlockSpec((tile_i, tile_j), lambda i, j: (i, j)),  # adj mask
                pl.BlockSpec((8, cp), lambda i, j: (0, 0)),           # att
                pl.BlockSpec((1, hcpw), lambda i, j: (0, 0)),         # out bias
            ],
            out_specs=pl.BlockSpec((tile_i, hcpw), lambda i, j: (i, 0)),
            scratch_shapes=[
                pltpu.VMEM((heads, tile_i, 1), jnp.float32),   # running max
                pltpu.VMEM((heads, tile_i, 1), jnp.float32),   # running sum
                pltpu.VMEM((tile_i, hcpw), jnp.float32),       # output accum
            ]),
        compiler_params=pltpu.CompilerParams(
            dimension_semantics=("parallel", "arbitrary"),
            vmem_limit_bytes=_vmem_limit_bytes()),
        cost_estimate=cost,
    )(xr, xl, adj_bias, attp, biasp)


# ---------------------------------------------------------------------------
# Parameter preparation (hoisted out of the forward hot path; done once)
# ---------------------------------------------------------------------------
def glorot(key, shape):
    fan_in, fan_out = shape[-2], shape[-1]
    lim = (6.0 / (fan_in + fan_out)) ** 0.5
    return jax.random.uniform(key, shape, jnp.float32, -lim, lim)


def init_gatv2_params(key, in_dim, out_ch, heads):
    k = jax.random.split(key, 6)
    hc = heads * out_ch
    wl = glorot(k[0], (in_dim, hc))
    bl = jax.random.normal(k[1], (1, hc), jnp.float32) * 0.02
    wr = glorot(k[2], (in_dim, hc))
    br = jax.random.normal(k[3], (1, hc), jnp.float32) * 0.02
    att = glorot(k[4], (heads, out_ch))
    bias = jax.random.normal(k[5], (1, hc), jnp.float32) * 0.02
    return (wl, bl, wr, br, att, bias)


def prepare_layer(params, in_map, in_width):
    """Pad a GATv2 layer to the lane-dense head-block layout.

    in_map[r] = padded input column holding real input feature r.
    Each head's C output channels occupy lanes [h*CP, h*CP + C), CP = 128*k.
    Padded rows/columns of the weights are zero, so padded input columns
    (whatever garbage they hold) never contribute.
    """
    wl, bl, wr, br, att, bias = params
    heads, c = att.shape
    hc = heads * c
    cp = _round_up(c, 128)
    hcpw = heads * cp
    ks = jnp.arange(hc)
    out_map = (ks // c) * cp + (ks % c)          # real out col -> padded col

    def pad_w(w):
        wp = jnp.zeros((in_width, hcpw), jnp.float32)
        return wp.at[in_map[:, None], out_map[None, :]].set(w)

    def pad_b(b):
        bp = jnp.zeros((1, hcpw), jnp.float32)
        return bp.at[0, out_map].set(b[0])

    wlr = jnp.concatenate([pad_w(wl), pad_w(wr)], axis=1).astype(jnp.bfloat16)
    blr = jnp.concatenate([pad_b(bl), pad_b(br)], axis=1)
    attp = jnp.zeros((8, cp), jnp.float32).at[:heads, :c].set(att)
    biasp = pad_b(bias)
    layer = dict(wlr=wlr, blr=blr, attp=attp, biasp=biasp,
                 heads=heads, cp=cp, hcpw=hcpw)
    return layer, out_map, hcpw


def prepare_model(hidden_params, out_params, in_dim):
    in_width = _round_up(in_dim, 128)
    in_map = jnp.arange(in_dim)
    layers = []
    for p in hidden_params:
        layer, in_map, in_width = prepare_layer(p, in_map, in_width)
        layers.append(layer)
    out_layer, out_map, _ = prepare_layer(out_params, in_map, in_width)
    return layers, out_layer, out_map


def build_adj_bias(edge_index, num_nodes, n_pad):
    """Additive mask: 0 where destination i receives from source j, else -1e30
    (self loops added, matching GATv2Conv(add_self_loops=True))."""
    src, dst = edge_index[0], edge_index[1]
    adj = jnp.full((n_pad, n_pad), NEG_BIG, jnp.float32)
    adj = adj.at[dst, src].set(0.0)
    idx = jnp.arange(num_nodes)
    adj = adj.at[idx, idx].set(0.0)
    return adj


def pick_tiles(n):
    if n <= 128:
        n_pad = _round_up(max(n, 32), 32)
        tile_i = max(16, n_pad // 2)     # >= 2 dest tiles -> both v7x cores
        tile_j = n_pad                   # single source chunk (== full dim)
    else:
        n_pad = _round_up(n, 256)
        tile_i = 128
        tile_j = 256
    return n_pad, tile_i, tile_j


# ---------------------------------------------------------------------------
# Forward pass
# ---------------------------------------------------------------------------
def run_layer(xb, adj_bias, layer, *, apply_softplus, out_dtype,
              tile_i, tile_j):
    hcpw = layer["hcpw"]
    xlr = fused_projection(xb, layer["wlr"], layer["blr"], tile_i)
    xl, xr = xlr[:, :hcpw], xlr[:, hcpw:]        # 128-aligned HBM slices
    return gatv2_attention(xl, xr, adj_bias, layer["attp"], layer["biasp"],
                           heads=layer["heads"], cp=layer["cp"],
                           tile_i=tile_i, tile_j=tile_j,
                           apply_softplus=apply_softplus, out_dtype=out_dtype)


def gcn_layers_forward(x, adj_bias, layers, out_layer, out_map,
                       tile_i, tile_j):
    n = x.shape[0]
    n_pad = adj_bias.shape[0]
    first = layers[0] if layers else out_layer
    in_width = first["wlr"].shape[0]

    # pad rows/features and cast to bf16 on the HBM side (halves DMA bytes)
    xp = jnp.zeros((n_pad, in_width), jnp.float32).at[:n, :x.shape[1]].set(x)
    xb = xp.astype(jnp.bfloat16)

    for layer in layers:
        xb = run_layer(xb, adj_bias, layer, apply_softplus=True,
                       out_dtype=jnp.bfloat16, tile_i=tile_i, tile_j=tile_j)
    y = run_layer(xb, adj_bias, out_layer, apply_softplus=False,
                  out_dtype=jnp.float32, tile_i=tile_i, tile_j=tile_j)
    return jnp.take(y[:n], out_map, axis=1)


if __name__ == "__main__":
    # Small, module-consistent config.
    num_nodes, in_dim, hid_dim, out_dim = 8, 8, 16, 8
    num_layers, heads = 2, 2

    root = jax.random.PRNGKey(0)
    kx, ke1, ke2, kp1, kp2 = jax.random.split(root, 5)

    x = jax.random.normal(kx, (num_nodes, in_dim), jnp.float32)

    num_edges = 12
    src = jax.random.randint(ke1, (num_edges,), 0, num_nodes)
    dst = jax.random.randint(ke2, (num_edges,), 0, num_nodes)
    edge_index = jnp.stack([src, dst], axis=0)           # [2, E] COO

    # num_layers = 2: one hidden GATv2(in -> hid//heads, heads) + out conv.
    hidden_params = [init_gatv2_params(kp1, in_dim, hid_dim // heads, heads)]
    out_params = init_gatv2_params(kp2, hid_dim, out_dim, 1)

    # Parameter prep hoisted out of the per-forward hot path (done once).
    layers, out_layer, out_map = prepare_model(hidden_params, out_params,
                                               in_dim)

    n_pad, tile_i, tile_j = pick_tiles(num_nodes)
    adj_bias = build_adj_bias(edge_index, num_nodes, n_pad)

    out = gcn_layers_forward(x, adj_bias, layers, out_layer, out_map,
                             tile_i, tile_j)
    out = jax.block_until_ready(out)
    assert out.shape == (num_nodes, out_dim)
    print("KERNEL_OK")
</pallas_src>

<mosaic_0001>
module attributes {stable_mosaic.version = 11 : i64} {
  func.func @linear_kernel(%arg0: i32, %arg1: memref<16x128xbf16, #tpu.memory_space<vmem>>, %arg2: memref<128x512xbf16, #tpu.memory_space<vmem>>, %arg3: memref<1x512xf32, #tpu.memory_space<vmem>>, %arg4: memref<16x512xbf16, #tpu.memory_space<vmem>>) attributes {dimension_semantics = [#tpu.dimension_semantics<parallel>], iteration_bounds = array<i64: 2>, scalar_prefetch = 0 : i64, scratch_operands = 0 : i64, tpu.core_type = #tpu.core_type<tc>, window_params = [{transform_indices = @transform_0, window_bounds = array<i64: 16, 128>}, {pipeline_mode = #tpu.pipeline_mode<synchronous>, transform_indices = @transform_1, window_bounds = array<i64: 128, 512>}, {pipeline_mode = #tpu.pipeline_mode<synchronous>, transform_indices = @transform_2, window_bounds = array<i64: 1, 512>}, {transform_indices = @transform_3, window_bounds = array<i64: 16, 512>}]} {
    %c0 = arith.constant 0 : index
    %c0_0 = arith.constant 0 : index
    %0 = vector.load %arg1[%c0, %c0_0] : memref<16x128xbf16, #tpu.memory_space<vmem>>, vector<16x128xbf16>
    %c0_1 = arith.constant 0 : index
    %c0_2 = arith.constant 0 : index
    %1 = vector.load %arg2[%c0_1, %c0_2] : memref<128x512xbf16, #tpu.memory_space<vmem>>, vector<128x512xbf16>
    %cst = arith.constant dense<0.000000e+00> : vector<16x512xf32>
    %2 = tpu.matmul %0, %1, %cst {dimension_numbers = #tpu.dot_dimension_numbers<[1], [0], [0], [1], [0, 0, 1, 1], [], []>} : vector<16x128xbf16>, vector<128x512xbf16>, vector<16x512xf32> -> vector<16x512xf32>
    %c0_3 = arith.constant 0 : index
    %c0_4 = arith.constant 0 : index
    %3 = vector.load %arg3[%c0_3, %c0_4] : memref<1x512xf32, #tpu.memory_space<vmem>>, vector<1x512xf32>
    %4 = vector.broadcast %3 : vector<1x512xf32> to vector<16x512xf32>
    %5 = arith.addf %2, %4 : vector<16x512xf32>
    %6 = arith.truncf %5 : vector<16x512xf32> to vector<16x512xbf16>
    %c0_5 = arith.constant 0 : index
    %c0_6 = arith.constant 0 : index
    %7 = vector.load %arg4[%c0_5, %c0_6] : memref<16x512xbf16, #tpu.memory_space<vmem>>, vector<16x512xbf16>
    tpu.vector_store %arg4[%c0_5, %c0_6], %6 {strides = array<i32>} : memref<16x512xbf16, #tpu.memory_space<vmem>>, vector<16x512xbf16>,
    return
  }
  func.func @transform_0(%arg0: i32) -> (i32, i32) {
    %c0_i32 = arith.constant 0 : i32
    %c0_i32_0 = arith.constant 0 : i32
    return %arg0, %c0_i32 : i32, i32
  }
  func.func @transform_1(%arg0: i32) -> (i32, i32) {
    %c0_i32 = arith.constant 0 : i32
    %c0_i32_0 = arith.constant 0 : i32
    %c0_i32_1 = arith.constant 0 : i32
    return %c0_i32, %c0_i32_0 : i32, i32
  }
  func.func @transform_2(%arg0: i32) -> (i32, i32) {
    %c0_i32 = arith.constant 0 : i32
    %c0_i32_0 = arith.constant 0 : i32
    %c0_i32_1 = arith.constant 0 : i32
    return %c0_i32, %c0_i32_0 : i32, i32
  }
  func.func @transform_3(%arg0: i32) -> (i32, i32) {
    %c0_i32 = arith.constant 0 : i32
    %c0_i32_0 = arith.constant 0 : i32
    return %arg0, %c0_i32 : i32, i32
  }
}

</mosaic_0001>

<llo_original>
// kernel: tpu_custom_call.1
$region0: #{tpu_custom_call.1}
  #allocation0 [shape = 'u32[]', space=smem, size = 0x4, offset = 0x4, fixed_abs, tag = 'smem constant byte address 0x4 - core index']
  #allocation1 [shape = 'u32[72,128]{1,0:T(1,128)}', space=vmem, size = 0x9000, scoped, tag = 'internal scratch']
  %s0 = inlined_call_operand.hbm [shape: bf16[32,128], index: 0, kind: input, shape index: {}]
  %s1 = inlined_call_operand.hbm [shape: bf16[128,512], index: 1, kind: input, shape index: {}]
  %s2 = inlined_call_operand.hbm [shape: f32[1,512], index: 2, kind: input, shape index: {}]
  %s3 = inlined_call_operand.hbm [shape: bf16[32,512], index: 3, kind: output, shape index: {}]
  %s4 = sld [smem:[#allocation0]]
  $region57: #{tpu_custom_call.1} parent=0
    _
  %s6 = ssub.s32 1, %s4
  %s7 = scalar_select 0, %s6, %s4
  $region1: #{tpu_custom_call.1} parent=0
    #allocation2 [shape = 'u8[8192]{0}', space=vmem, size = 0x2000, scoped, tag = 'input window, operand 0']
    #allocation3 [shape = 's32[2]{0}', space=sflag, size = 0x8, scoped, tag = 'scoped memory for tpu_custom_call.1']
    #allocation4 [shape = 's32[2]{0}', space=sflag, size = 0x8, scoped, tag = 'scoped memory for tpu_custom_call.1']
    #allocation5 [shape = 'u8[131072]{0}', space=vmem, size = 0x20000, scoped, tag = 'input window, operand 1, single buffered']
    #allocation6 [shape = 's32[1]{0}', space=sflag, size = 0x4, scoped, tag = 'scoped memory for tpu_custom_call.1']
    #allocation7 [shape = 'u8[2048]{0}', space=vmem, size = 0x800, scoped, tag = 'input window, operand 2, single buffered']
    #allocation8 [shape = 'u8[32768]{0}', space=vmem, size = 0x8000, scoped, tag = 'output window, operand 0']
    %8 = vsyncpa [#allocation3], 0
    %s9 = scalar_lea.sflag [#allocation3], 1
    %10 = vsyncpa %s9, 0
    %11 = vsyncpa [#allocation6], 0
    %12 = vsyncpa [#allocation4], 0
    %s13 = scalar_lea.sflag [#allocation4], 1
    %14 = vsyncpa %s13, 0
    loop: start=0, step=1, limit=4
    $region2: #{tpu_custom_call.1} parent=1 // loop_pre_header
      _
    $region3: #{tpu_custom_call.1} parent=1 // loop_header
      %s16 = sphi 0, %s20
      %p17 = scmp.ge.s32.totalorder %s16, 4
      %s26 = sphi 0, %s28
      %s29 = sphi 0, %s26
      %s30 = sphi 0, %s29
      %s46 = sphi 0, %s30
      %s50 = sphi 0, %s50
      %s52 = sphi 0, %s50
      %s53 = sphi 0, %s52
      %s67 = sphi 0, %s53
      %s71 = sphi 0, %s71
      %s73 = sphi 0, %s71
      %s74 = sphi 0, %s73
      %s88 = sphi 0, %s74
      %s94 = sphi 0, %s96
      %s97 = sphi 0, %s94
      %s98 = sphi 0, %s97
      %s114 = sphi 0, %s98
    $region4: #{tpu_custom_call.1} parent=1 // loop_header_branch
      %19 = sbr.rel (%p17) target = $region8
    $region5: #{tpu_custom_call.1} parent=1 // loop_body
      %s21 = ssub.s32 %s16, 1
      %s22 = ssub.s32 %s16, 2
      %s23 = sadd.s32 %s16, 1
      %s24 = ssub.s32 %s16, %s23
      %p25 = scmp.eq.s32.totalorder %s24, 0
      %s27 = sadd.s32 %s26, 1
      %s28 = scalar_select %p25, %s26, %s27
      %p31 = pneg %p25
      %p32 = scmp.eq.s32.totalorder %s16, 1
      %p33 = por %p31, %p32
      %p34 = scmp.ne.s32.totalorder %s26, %s29
      %p35 = scmp.eq.s32.totalorder %s16, 0
      %p36 = por %p34, %p35
      %p37 = scmp.ne.s32.totalorder %s26, %s29
      %p38 = scmp.eq.s32.totalorder %s21, 1
      %p39 = por %p37, %p38
      %p40 = scmp.ne.s32.totalorder %s29, %s30
      %p41 = scmp.eq.s32.totalorder %s21, 0
      %p42 = por %p40, %p41
      %p43 = scmp.ne.s32.totalorder %s29, %s30
      %p44 = scmp.eq.s32.totalorder %s22, 1
      %p45 = por %p43, %p44
      %p47 = scmp.ne.s32.totalorder %s30, %s46
      %p48 = scmp.eq.s32.totalorder %s22, 0
      %p49 = por %p47, %p48
      %s51 = sadd.s32 %s50, 1
      %p54 = scmp.eq.s32.totalorder %s16, 1
      %p55 = scmp.ne.s32.totalorder %s50, %s52
      %p56 = scmp.eq.s32.totalorder %s16, 0
      %p57 = por %p55, %p56
      %p58 = scmp.ne.s32.totalorder %s50, %s52
      %p59 = scmp.eq.s32.totalorder %s21, 1
      %p60 = por %p58, %p59
      %p61 = scmp.ne.s32.totalorder %s52, %s53
      %p62 = scmp.eq.s32.totalorder %s21, 0
      %p63 = por %p61, %p62
      %p64 = scmp.ne.s32.totalorder %s52, %s53
      %p65 = scmp.eq.s32.totalorder %s22, 1
      %p66 = por %p64, %p65
      %p68 = scmp.ne.s32.totalorder %s53, %s67
      %p69 = scmp.eq.s32.totalorder %s22, 0
      %p70 = por %p68, %p69
      %s72 = sadd.s32 %s71, 1
      %p75 = scmp.eq.s32.totalorder %s16, 1
      %p76 = scmp.ne.s32.totalorder %s71, %s73
      %p77 = scmp.eq.s32.totalorder %s16, 0
      %p78 = por %p76, %p77
      %p79 = scmp.ne.s32.totalorder %s71, %s73
      %p80 = scmp.eq.s32.totalorder %s21, 1
      %p81 = por %p79, %p80
      %p82 = scmp.ne.s32.totalorder %s73, %s74
      %p83 = scmp.eq.s32.totalorder %s21, 0
      %p84 = por %p82, %p83
      %p85 = scmp.ne.s32.totalorder %s73, %s74
      %p86 = scmp.eq.s32.totalorder %s22, 1
      %p87 = por %p85, %p86
      %p89 = scmp.ne.s32.totalorder %s74, %s88
      %p90 = scmp.eq.s32.totalorder %s22, 0
      %p91 = por %p89, %p90
      %s92 = ssub.s32 %s16, %s23
      %p93 = scmp.eq.s32.totalorder %s92, 0
      %s95 = sadd.s32 %s94, 1
      %s96 = scalar_select %p93, %s94, %s95
      %p99 = pneg %p93
      %p100 = scmp.eq.s32.totalorder %s16, 1
      %p101 = por %p99, %p100
      %p102 = scmp.ne.s32.totalorder %s94, %s97
      %p103 = scmp.eq.s32.totalorder %s16, 0
      %p104 = por %p102, %p103
      %p105 = scmp.ne.s32.totalorder %s94, %s97
      %p106 = scmp.eq.s32.totalorder %s21, 1
      %p107 = por %p105, %p106
      %p108 = scmp.ne.s32.totalorder %s97, %s98
      %p109 = scmp.eq.s32.totalorder %s21, 0
      %p110 = por %p108, %p109
      %p111 = scmp.ne.s32.totalorder %s97, %s98
      %p112 = scmp.eq.s32.totalorder %s22, 1
      %p113 = por %p111, %p112
      %p115 = scmp.ne.s32.totalorder %s98, %s114
      %p116 = scmp.eq.s32.totalorder %s22, 0
      %p117 = por %p115, %p116
      %p118 = scmp.le.s32.totalorder 1, %s16
      %p119 = scmp.lt.s32.totalorder %s16, 3
      %p120 = pnand %p118, %p119
      %p121 = pneg %p120
      // Predicated region
      $region9: #{tpu_custom_call.1} parent=5 // pred_check
        _
      $region10: #{tpu_custom_call.1} parent=5 // pred_check_branch
        %123 = sbr.rel (%p120) target = $region12
      $region11: #{tpu_custom_call.1} parent=5 // pred_region
        %s124 = ssub.s32 %s16, 1
        // Predicated region
        $region13: #{tpu_custom_call.1} parent=11 // pred_check
          %p125 = pneg %p63
        $region14: #{tpu_custom_call.1} parent=11 // pred_check_branch
          %127 = sbr.rel (%p125) target = $region16
        $region15: #{tpu_custom_call.1} parent=11 // pred_region
          %129 = vsyncadd [#allocation6], 0
          %s130 = sshll.u32 %s1, 4
          %s131 = int_to_ptr.hbm [resolvable:$true] %s130
          %s132 = sshll.u32 [#allocation5], 4
          %s133 = int_to_ptr.vmem [resolvable:$true] %s132
          %138 = dma.hbm_to_vmem [thread:$0]  %s131, 4096, %s133, [#allocation6], 256, 256, 16
        $region16: #{tpu_custom_call.1} parent=11 // pred_fallthru
          _
        // Predicated region
        $region17: #{tpu_custom_call.1} parent=11 // pred_check
          %p139 = pneg %p84
        $region18: #{tpu_custom_call.1} parent=11 // pred_check_branch
          %141 = sbr.rel (%p139) target = $region20
        $region19: #{tpu_custom_call.1} parent=11 // pred_region
          %143 = vsyncadd [#allocation6], 0
          %s145 = sshll.u32 %s2, 4
          %s146 = int_to_ptr.hbm [resolvable:$true] %s145
          %s147 = sshll.u32 [#allocation7], 4
          %s148 = int_to_ptr.vmem [resolvable:$true] %s147
          %150 = dma.hbm_to_vmem [thread:$0]  %s146, 64, %s148, [#allocation6]
        $region20: #{tpu_custom_call.1} parent=11 // pred_fallthru
          _
      $region12: #{tpu_custom_call.1} parent=5 // pred_fallthru
        _
      %p151 = scmp.lt.s32.totalorder %s16, 2
      // Predicated region
      $region21: #{tpu_custom_call.1} parent=5 // pred_check
        %p152 = pneg %p151
      $region22: #{tpu_custom_call.1} parent=5 // pred_check_branch
        %154 = sbr.rel (%p152) target = $region24
      $region23: #{tpu_custom_call.1} parent=5 // pred_region
        // Predicated region
        $region25: #{tpu_custom_call.1} parent=23 // pred_check
          %p155 = pneg %p36
        $region26: #{tpu_custom_call.1} parent=23 // pred_check_branch
          %157 = sbr.rel (%p155) target = $region28
        $region27: #{tpu_custom_call.1} parent=23 // pred_region
          %s158 = sand.u32 %s26, 1
          %s159 = scalar_lea.sflag [#allocation3], %s158
          %s160 = sand.u32 %s26, 1
          %s161 = smul.addr %s160, 8
          %s162 = scalar_lea.vmem [#allocation2], %s161
          %s163 = smul.u32 2, %s16
          %165 = vsyncadd %s159, 0
          %s166 = smul.addr %s163, 4
          %s167 = scalar_lea.hbm %s0, %s166
          %s168 = sshll.u32 %s167, 4
          %s169 = int_to_ptr.hbm [resolvable:$true] %s168
          %s170 = sshll.u32 %s162, 4
          %s171 = int_to_ptr.vmem [resolvable:$true] %s170
          %176 = dma.hbm_to_vmem [thread:$0]  %s169, 128, %s171, %s159, 64, 64, 4
        $region28: #{tpu_custom_call.1} parent=23 // pred_fallthru
          _
      $region24: #{tpu_custom_call.1} parent=5 // pred_fallthru
        _
      %p177 = scmp.le.s32.totalorder 1, %s16
      %p178 = scmp.lt.s32.totalorder %s16, 3
      %p179 = pnand %p177, %p178
      %p180 = pneg %p179
      // Predicated region
      $region29: #{tpu_custom_call.1} parent=5 // pred_check
        _
      $region30: #{tpu_custom_call.1} parent=5 // pred_check_branch
        %182 = sbr.rel (%p179) target = $region32
      $region31: #{tpu_custom_call.1} parent=5 // pred_region
        %s183 = ssub.s32 %s16, 1
        %s184 = sand.u32 %s29, 1
        %s185 = scalar_lea.sflag [#allocation3], %s184
        %s186 = sand.u32 %s29, 1
        %s187 = smul.addr %s186, 8
        %s188 = scalar_lea.vmem [#allocation2], %s187
        // Predicated region
        $region33: #{tpu_custom_call.1} parent=31 // pred_check
          %p189 = pneg %p42
        $region34: #{tpu_custom_call.1} parent=31 // pred_check_branch
          %191 = sbr.rel (%p189) target = $region36
        $region35: #{tpu_custom_call.1} parent=31 // pred_region
          %193 = dma.done %s185, 128
        $region36: #{tpu_custom_call.1} parent=31 // pred_fallthru
          _
        // Predicated region
        $region37: #{tpu_custom_call.1} parent=31 // pred_check
          %p194 = pneg %p63
        $region38: #{tpu_custom_call.1} parent=31 // pred_check_branch
          %196 = sbr.rel (%p194) target = $region40
        $region39: #{tpu_custom_call.1} parent=31 // pred_region
          %198 = dma.done [#allocation6], 4096
        $region40: #{tpu_custom_call.1} parent=31 // pred_fallthru
          _
        // Predicated region
        $region41: #{tpu_custom_call.1} parent=31 // pred_check
          %p199 = pneg %p84
        $region42: #{tpu_custom_call.1} parent=31 // pred_check_branch
          %201 = sbr.rel (%p199) target = $region44
        $region43: #{tpu_custom_call.1} parent=31 // pred_region
          %203 = dma.done [#allocation6], 64
        $region44: #{tpu_custom_call.1} parent=31 // pred_fallthru
          _
        %s204 = sand.u32 %s29, 1
        %s205 = scalar_lea.sflag [#allocation3], %s204
        %s206 = sand.u32 %s29, 1
        %s207 = smul.addr %s206, 8
        %s208 = scalar_lea.vmem [#allocation2], %s207
        %p209 = pneg %p42
        %p210 = pneg %p39
        %p211 = pneg %p63
        %p212 = pneg %p60
        %p213 = pneg %p84
        %p214 = pneg %p81
        %p215 = pneg %p110
        %p216 = pneg %p107
        %s217 = sand.u32 %s97, 1
        %s218 = scalar_lea.sflag [#allocation4], %s217
        %s219 = sand.u32 %s97, 1
        %s220 = smul.addr %s219, 32
        %s221 = scalar_lea.vmem [#allocation8], %s220
        %s222 = smul.u32 2, %s21
        %s223 = smul.u32 2, %s21
        %v224 = vld [vmem:[%s188] sm:$0xf]
        %v225 = vld [vmem:[%s188 + $0x4] sm:$0xf]
        %v226 = vld [vmem:[#allocation5] sm:$0xff]
        %v227 = vld [vmem:[#allocation5 + $0x8] sm:$0xff]
        %v228 = vld [vmem:[#allocation5 + $0x10] sm:$0xff]
        %v229 = vld [vmem:[#allocation5 + $0x18] sm:$0xff]
        %v230 = vld [vmem:[#allocation5 + $0x20] sm:$0xff]
        %v231 = vld [vmem:[#allocation5 + $0x28] sm:$0xff]
        %v232 = vld [vmem:[#allocation5 + $0x30] sm:$0xff]
        %v233 = vld [vmem:[#allocation5 + $0x38] sm:$0xff]
        %v234 = vld [vmem:[#allocation5 + $0x40] sm:$0xff]
        %v235 = vld [vmem:[#allocation5 + $0x48] sm:$0xff]
        %v236 = vld [vmem:[#allocation5 + $0x50] sm:$0xff]
        %v237 = vld [vmem:[#allocation5 + $0x58] sm:$0xff]
        %v238 = vld [vmem:[#allocation5 + $0x60] sm:$0xff]
        %v239 = vld [vmem:[#allocation5 + $0x68] sm:$0xff]
        %v240 = vld [vmem:[#allocation5 + $0x70] sm:$0xff]
        %v241 = vld [vmem:[#allocation5 + $0x78] sm:$0xff]
        %v242 = vld [vmem:[#allocation5 + $0x80] sm:$0xff]
        %v243 = vld [vmem:[#allocation5 + $0x88] sm:$0xff]
        %v244 = vld [vmem:[#allocation5 + $0x90] sm:$0xff]
        %v245 = vld [vmem:[#allocation5 + $0x98] sm:$0xff]
        %v246 = vld [vmem:[#allocation5 + $0xa0] sm:$0xff]
        %v247 = vld [vmem:[#allocation5 + $0xa8] sm:$0xff]
        %v248 = vld [vmem:[#allocation5 + $0xb0] sm:$0xff]
        %v249 = vld [vmem:[#allocation5 + $0xb8] sm:$0xff]
        %v250 = vld [vmem:[#allocation5 + $0xc0] sm:$0xff]
        %v251 = vld [vmem:[#allocation5 + $0xc8] sm:$0xff]
        %v252 = vld [vmem:[#allocation5 + $0xd0] sm:$0xff]
        %v253 = vld [vmem:[#allocation5 + $0xd8] sm:$0xff]
        %v254 = vld [vmem:[#allocation5 + $0xe0] sm:$0xff]
        %v255 = vld [vmem:[#allocation5 + $0xe8] sm:$0xff]
        %v256 = vld [vmem:[#allocation5 + $0xf0] sm:$0xff]
        %v257 = vld [vmem:[#allocation5 + $0xf8] sm:$0xff]
        %v258 = vld [vmem:[#allocation7] sm:$0xf]
        %v260 = vperm.slane %v258, 0
        %v261 = vperm.slane %v258, 1
        %v262 = vperm.slane %v258, 2
        %v263 = vperm.slane %v258, 3
        %v270 = vunpack.c.l.b16 %v224
        %v271 = vunpack.c.l.b16 %v225
        %v272 = vpack.c.b16 %v271, %v270
        %v306 = vunpack.c.l.b16 %v226
        %v307 = vunpack.c.h.b16 %v226
        %v308 = vunpack.c.l.b16 %v227
        %v309 = vunpack.c.h.b16 %v227
        %v310 = vunpack.c.l.b16 %v228
        %v311 = vunpack.c.h.b16 %v228
        %v312 = vunpack.c.l.b16 %v229
        %v313 = vunpack.c.h.b16 %v229
        %v314 = vunpack.c.l.b16 %v230
        %v315 = vunpack.c.h.b16 %v230
        %v316 = vunpack.c.l.b16 %v231
        %v317 = vunpack.c.h.b16 %v231
        %v318 = vunpack.c.l.b16 %v232
        %v319 = vunpack.c.h.b16 %v232
        %v320 = vunpack.c.l.b16 %v233
        %v321 = vunpack.c.h.b16 %v233
        %v322 = vunpack.c.l.b16 %v234
        %v323 = vunpack.c.h.b16 %v234
        %v324 = vunpack.c.l.b16 %v235
        %v325 = vunpack.c.h.b16 %v235
        %v326 = vunpack.c.l.b16 %v236
        %v327 = vunpack.c.h.b16 %v236
        %v328 = vunpack.c.l.b16 %v237
        %v329 = vunpack.c.h.b16 %v237
        %v330 = vunpack.c.l.b16 %v238
        %v331 = vunpack.c.h.b16 %v238
        %v332 = vunpack.c.l.b16 %v239
        %v333 = vunpack.c.h.b16 %v239
        %v334 = vunpack.c.l.b16 %v240
        %v335 = vunpack.c.h.b16 %v240
        %v336 = vunpack.c.l.b16 %v241
        %v337 = vunpack.c.h.b16 %v241
        %v338 = vunpack.c.l.b16 %v242
        %v339 = vunpack.c.h.b16 %v242
        %v340 = vunpack.c.l.b16 %v243
        %v341 = vunpack.c.h.b16 %v243
        %v342 = vunpack.c.l.b16 %v244
        %v343 = vunpack.c.h.b16 %v244
        %v344 = vunpack.c.l.b16 %v245
        %v345 = vunpack.c.h.b16 %v245
        %v346 = vunpack.c.l.b16 %v246
        %v347 = vunpack.c.h.b16 %v246
        %v348 = vunpack.c.l.b16 %v247
        %v349 = vunpack.c.h.b16 %v247
        %v350 = vunpack.c.l.b16 %v248
        %v351 = vunpack.c.h.b16 %v248
        %v352 = vunpack.c.l.b16 %v249
        %v353 = vunpack.c.h.b16 %v249
        %v354 = vunpack.c.l.b16 %v250
        %v355 = vunpack.c.h.b16 %v250
        %v356 = vunpack.c.l.b16 %v251
        %v357 = vunpack.c.h.b16 %v251
        %v358 = vunpack.c.l.b16 %v252
        %v359 = vunpack.c.h.b16 %v252
        %v360 = vunpack.c.l.b16 %v253
        %v361 = vunpack.c.h.b16 %v253
        %v362 = vunpack.c.l.b16 %v254
        %v363 = vunpack.c.h.b16 %v254
        %v364 = vunpack.c.l.b16 %v255
        %v365 = vunpack.c.h.b16 %v255
        %v366 = vunpack.c.l.b16 %v256
        %v367 = vunpack.c.h.b16 %v256
        %v368 = vunpack.c.l.b16 %v257
        %v369 = vunpack.c.h.b16 %v257
        %v370 = vpack.c.b16 %v310, %v306
        %v371 = vpack.c.b16 %v311, %v307
        %v372 = vpack.c.b16 %v312, %v308
        %v373 = vpack.c.b16 %v313, %v309
        %v374 = vpack.c.b16 %v318, %v314
        %v375 = vpack.c.b16 %v319, %v315
        %v376 = vpack.c.b16 %v320, %v316
        %v377 = vpack.c.b16 %v321, %v317
        %v378 = vpack.c.b16 %v326, %v322
        %v379 = vpack.c.b16 %v327, %v323
        %v380 = vpack.c.b16 %v328, %v324
        %v381 = vpack.c.b16 %v329, %v325
        %v382 = vpack.c.b16 %v334, %v330
        %v383 = vpack.c.b16 %v335, %v331
        %v384 = vpack.c.b16 %v336, %v332
        %v385 = vpack.c.b16 %v337, %v333
        %v386 = vpack.c.b16 %v342, %v338
        %v387 = vpack.c.b16 %v343, %v339
        %v388 = vpack.c.b16 %v344, %v340
        %v389 = vpack.c.b16 %v345, %v341
        %v390 = vpack.c.b16 %v350, %v346
        %v391 = vpack.c.b16 %v351, %v347
        %v392 = vpack.c.b16 %v352, %v348
        %v393 = vpack.c.b16 %v353, %v349
        %v394 = vpack.c.b16 %v358, %v354
        %v395 = vpack.c.b16 %v359, %v355
        %v396 = vpack.c.b16 %v360, %v356
        %v397 = vpack.c.b16 %v361, %v357
        %v398 = vpack.c.b16 %v366, %v362
        %v399 = vpack.c.b16 %v367, %v363
        %v400 = vpack.c.b16 %v368, %v364
        %v401 = vpack.c.b16 %v369, %v365
        %434 = vmatpush.bf16.msra.mxu0 %v398
        %435 = vmatpush.bf16.msra.mxu0 %v394
        %436 = vmatpush.bf16.msra.mxu0 %v390
        %437 = vmatpush.bf16.msra.mxu0 %v386
        %438 = vmatpush.bf16.msra.mxu0 %v382
        %439 = vmatpush.bf16.msra.mxu0 %v378
        %440 = vmatpush.bf16.msra.mxu0 %v374
        %441 = vmatpush.bf16.msra.mxu0 %v370
        %442 = vmatmul.bf16.gmra.mxu0 %v272
        %v443 = vpop.f32.mrf.mxu0
        %v444 = vadd.f32 %v260, %v443
        %v445 = vpop.f32.mrf.mxu0
        %v446 = vadd.f32 %v260, %v445
        %447 = vdwg.mxu0
        %448 = vmatpush.bf16.msra.mxu0 %v399
        %449 = vmatpush.bf16.msra.mxu0 %v395
        %450 = vmatpush.bf16.msra.mxu0 %v391
        %451 = vmatpush.bf16.msra.mxu0 %v387
        %452 = vmatpush.bf16.msra.mxu0 %v383
        %453 = vmatpush.bf16.msra.mxu0 %v379
        %454 = vmatpush.bf16.msra.mxu0 %v375
        %455 = vmatpush.bf16.msra.mxu0 %v371
        %456 = vmatmul.bf16.gmra.mxu0 %v272
        %v457 = vpop.f32.mrf.mxu0
        %v458 = vadd.f32 %v261, %v457
        %v459 = vpop.f32.mrf.mxu0
        %v460 = vadd.f32 %v261, %v459
        %461 = vdwg.mxu0
        %462 = vmatpush.bf16.msra.mxu0 %v400
        %463 = vmatpush.bf16.msra.mxu0 %v396
        %464 = vmatpush.bf16.msra.mxu0 %v392
        %465 = vmatpush.bf16.msra.mxu0 %v388
        %466 = vmatpush.bf16.msra.mxu0 %v384
        %467 = vmatpush.bf16.msra.mxu0 %v380
        %468 = vmatpush.bf16.msra.mxu0 %v376
        %469 = vmatpush.bf16.msra.mxu0 %v372
        %470 = vmatmul.bf16.gmra.mxu0 %v272
        %v471 = vpop.f32.mrf.mxu0
        %v472 = vadd.f32 %v262, %v471
        %v473 = vpop.f32.mrf.mxu0
        %v474 = vadd.f32 %v262, %v473
        %475 = vdwg.mxu0
        %476 = vmatpush.bf16.msra.mxu0 %v401
        %477 = vmatpush.bf16.msra.mxu0 %v397
        %478 = vmatpush.bf16.msra.mxu0 %v393
        %479 = vmatpush.bf16.msra.mxu0 %v389
        %480 = vmatpush.bf16.msra.mxu0 %v385
        %481 = vmatpush.bf16.msra.mxu0 %v381
        %482 = vmatpush.bf16.msra.mxu0 %v377
        %483 = vmatpush.bf16.msra.mxu0 %v373
        %484 = vmatmul.bf16.gmra.mxu0 %v272
        %v485 = vpop.f32.mrf.mxu0
        %v486 = vadd.f32 %v263, %v485
        %v487 = vpop.f32.mrf.mxu0
        %v488 = vadd.f32 %v263, %v487
        %489 = vdwg.mxu0
        %v490 = vpack.c.bf16 %v458, %v444
        %v491 = vpack.c.bf16 %v486, %v472
        %v492 = vpack.c.bf16 %v460, %v446
        %v493 = vpack.c.bf16 %v488, %v474
        %494 = vst [vmem:[%s221] sm:$0xff] %v490
        %495 = vst [vmem:[%s221 + $0x8] sm:$0xff] %v491
        %496 = vst [vmem:[%s221 + $0x10] sm:$0xff] %v492
        %497 = vst [vmem:[%s221 + $0x18] sm:$0xff] %v493
        %s498 = sand.u32 %s97, 1
        %s499 = scalar_lea.sflag [#allocation4], %s498
        %s500 = sand.u32 %s97, 1
        %s501 = smul.addr %s500, 32
        %s502 = scalar_lea.vmem [#allocation8], %s501
        // Predicated region
        $region45: #{tpu_custom_call.1} parent=31 // pred_check
          %p503 = pneg %p107
        $region46: #{tpu_custom_call.1} parent=31 // pred_check_branch
          %505 = sbr.rel (%p503) target = $region48
        $region47: #{tpu_custom_call.1} parent=31 // pred_region
          %s506 = smul.u32 2, %s21
          %508 = vsyncadd %s499, 0
          %s509 = smul.addr %s506, 4
          %s510 = smul.addr %s509, 4
          %s511 = scalar_lea.hbm %s3, %s510
          %s512 = sshll.u32 %s502, 4
          %s513 = int_to_ptr.vmem [resolvable:$true] %s512
          %s514 = sshll.u32 %s511, 4
          %s515 = int_to_ptr.hbm [resolvable:$true] %s514
          %520 = dma.vmem_to_hbm [thread:$0]  %s513, 512, %s515, %s499, 256, 256, 16
        $region48: #{tpu_custom_call.1} parent=31 // pred_fallthru
          _
      $region32: #{tpu_custom_call.1} parent=5 // pred_fallthru
        _
      %p521 = scmp.le.s32.totalorder 2, %s16
      // Predicated region
      $region49: #{tpu_custom_call.1} parent=5 // pred_check
        %p522 = pneg %p521
      $region50: #{tpu_custom_call.1} parent=5 // pred_check_branch
        %524 = sbr.rel (%p522) target = $region52
      $region51: #{tpu_custom_call.1} parent=5 // pred_region
        %s525 = ssub.s32 %s16, 2
        // Predicated region
        $region53: #{tpu_custom_call.1} parent=51 // pred_check
          %p526 = pneg %p113
        $region54: #{tpu_custom_call.1} parent=51 // pred_check_branch
          %528 = sbr.rel (%p526) target = $region56
        $region55: #{tpu_custom_call.1} parent=51 // pred_region
          %s529 = sand.u32 %s98, 1
          %s530 = scalar_lea.sflag [#allocation4], %s529
          %s531 = sand.u32 %s98, 1
          %s532 = smul.addr %s531, 32
          %s533 = scalar_lea.vmem [#allocation8], %s532
          %535 = dma.done %s530, 512
        $region56: #{tpu_custom_call.1} parent=51 // pred_fallthru
          _
      $region52: #{tpu_custom_call.1} parent=5 // pred_fallthru
        _
    $region6: #{tpu_custom_call.1} parent=1 // loop_footer
      %s20 = sadd.s32 1, %s16
    $region7: #{tpu_custom_call.1} parent=1 // loop_footer_branch
      %15 = sbr.rel target = $region3
    $region8: #{tpu_custom_call.1} parent=1 // loop_exit
      _
    %536 = vsyncpa [#allocation3], 1
    %s537 = scalar_lea.sflag [#allocation3], 1
    %538 = vsyncpa %s537, 1
    %539 = vsyncpa [#allocation6], 1
    %540 = vsyncpa [#allocation4], 1
    %s541 = scalar_lea.sflag [#allocation4], 1
    %542 = vsyncpa %s541, 1

</llo_original>
